<compile_context>
chip_gen: v7x
topology: tpu7x:2x2x1
jax: 0.10.0
libtpu: 0.0.40
codegen_flags: <defaults>
</compile_context>

<pallas_src>
import jax
import jax.numpy as jnp
from jax.experimental import pallas as pl
from jax.experimental.pallas import tpu as pltpu

GRID_MIN = -1.0
GRID_MAX = 1.0
NUM_GRIDS = 8
LN_EPS = 1e-5
_INV_DENOM = (NUM_GRIDS - 1) / (GRID_MAX - GRID_MIN)   # 1 / RBF denominator (constant)


# ----------------------------- Pallas kernel ---------------------------------
def _fastkan_layer(x, r_ref, off_ref, ws_ref, wb_ref, b_ref):
    """One FastKAN layer on an in-register activation x: [B, in] -> [B, out]."""
    # LayerNorm statistics (biased variance, eps=1e-5, matches nn.LayerNorm). gamma/beta are
    # folded into R / off_row, so only the normalization happens here.
    mean = jnp.mean(x, axis=-1, keepdims=True)
    xc = x - mean
    var = jnp.mean(xc * xc, axis=-1, keepdims=True)
    xn = xc * jax.lax.rsqrt(var + LN_EPS)                                 # [B, in]

    # Grid-major RBF argument via MXU replication: z[:, g*in+j] = (ln[:, j] - grid[g]) / denom.
    z = jnp.dot(xn, r_ref[...], preferred_element_type=jnp.float32) + off_ref[...]   # [B, G*in]
    basis = jnp.exp(-(z * z))                                             # [B, G*in]

    # Base activation: silu via logistic (EUP path, no explicit divide).
    silu = x * jax.lax.logistic(x)                                        # [B, in]

    y = jnp.dot(basis, ws_ref[...], preferred_element_type=jnp.float32)  # spline part
    y = y + jnp.dot(silu, wb_ref[...], preferred_element_type=jnp.float32)  # base part
    return y + b_ref[...]                                                 # [B, out]


def _fused_fastkan_kernel(x_ref,
                          r0_ref, off0_ref, ws0_ref, wb0_ref, b0_ref,
                          r1_ref, off1_ref, ws1_ref, wb1_ref, b1_ref,
                          o_ref):
    x = x_ref[...].astype(jnp.float32)                                    # [B, in0]
    h = _fastkan_layer(x, r0_ref, off0_ref, ws0_ref, wb0_ref, b0_ref)     # [B, hidden]
    y = _fastkan_layer(h, r1_ref, off1_ref, ws1_ref, wb1_ref, b1_ref)     # [B, out]
    o_ref[...] = y.astype(o_ref.dtype)


# ------------------- one-time parameter preparation (hoisted) -----------------
def prepare_layer_params(gamma, beta, w_spline, w_base, b_base):
    """Convert torch-layout params into the kernel's fused layout.

    gamma/beta: [in]; w_spline: [out, in*G] (flat basis index = i*G + g);
    w_base: [out, in]; b_base: [out].

    Returns (R, off_row, Ws, Wb, b_row):
      R       [in, G*in]   replication matrix with gamma/denom folded in
      off_row [1, G*in]    (beta[j] - grid[g]) / denom, column = g*in + j
      Ws      [G*in, out]  spline weight, grid-major rows
      Wb      [in, out]    base weight (transposed)
      b_row   [1, out]     base bias
    """
    out_dim, in_dim = w_base.shape
    lin = jnp.linspace(GRID_MIN, GRID_MAX, NUM_GRIDS, dtype=jnp.float32)   # [G]

    r = jnp.tile(jnp.diag(gamma.astype(jnp.float32)) * _INV_DENOM,
                 (1, NUM_GRIDS))                                           # [in, G*in]
    off_row = ((beta.astype(jnp.float32)[None, :] - lin[:, None]) * _INV_DENOM
               ).reshape(1, NUM_GRIDS * in_dim)                            # [1, G*in]

    # Spline weight -> grid-major [G*in, out] (row = g*in + i).
    ws = jnp.transpose(w_spline.reshape(out_dim, in_dim, NUM_GRIDS), (2, 1, 0))
    ws = ws.reshape(NUM_GRIDS * in_dim, out_dim)
    wb = w_base.T                                                          # [in, out]
    b_row = b_base.reshape(1, out_dim)
    return (r, off_row, ws, wb, b_row)


def prepare_params(raw_params):
    return {name: prepare_layer_params(*p) for name, p in raw_params.items()}


# ------------------------------ JAX wrapper -----------------------------------
def _pick_block_batch(B):
    """Batch tile: big enough to amortize per-step overhead, >=2 blocks for large batches."""
    if B <= 1024:
        return B                                  # single block; block == full dim is always legal
    bm = min(2048, -(-pl.cdiv(B, 2) // 8) * 8)    # >=2 blocks, multiple of 8, cap 2048
    return bm


def parametrization_network_fastkan(x, prepared):
    """Fused FastKAN([koopman_dim, hidden_dim, latent_dim]) forward. x: [B, koopman_dim]."""
    r0, off0, ws0, wb0, b0 = prepared["layer0"]
    r1, off1, ws1, wb1, b1 = prepared["layer1"]
    B, in0 = x.shape
    hid = ws0.shape[1]
    in1 = r1.shape[0]
    out = ws1.shape[1]
    assert hid == in1, "layer0 output dim must match layer1 input dim"
    gin0 = NUM_GRIDS * in0
    gin1 = NUM_GRIDS * in1

    bm = _pick_block_batch(B)
    grid = (pl.cdiv(B, bm),)

    # Only bump scoped VMEM when tiles are big (v5e default is 16 MiB); tiny tiles use defaults.
    vmem_limit = 48 * 1024 * 1024 if bm >= 1024 else None

    resident = lambda i: (0, 0)   # weights stay resident across batch tiles
    return pl.pallas_call(
        _fused_fastkan_kernel,
        out_shape=jax.ShapeDtypeStruct((B, out), jnp.float32),
        grid=grid,
        in_specs=[
            pl.BlockSpec((bm, in0), lambda i: (i, 0)),
            pl.BlockSpec((in0, gin0), resident),
            pl.BlockSpec((1, gin0), resident),
            pl.BlockSpec((gin0, hid), resident),
            pl.BlockSpec((in0, hid), resident),
            pl.BlockSpec((1, hid), resident),
            pl.BlockSpec((in1, gin1), resident),
            pl.BlockSpec((1, gin1), resident),
            pl.BlockSpec((gin1, out), resident),
            pl.BlockSpec((in1, out), resident),
            pl.BlockSpec((1, out), resident),
        ],
        out_specs=pl.BlockSpec((bm, out), lambda i: (i, 0)),
        compiler_params=pltpu.CompilerParams(
            dimension_semantics=("parallel",),
            vmem_limit_bytes=vmem_limit),
    )(x, r0, off0, ws0, wb0, b0, r1, off1, ws1, wb1, b1)


# --------------------------- parameter init (synthetic) -----------------------
def init_layer_params(key, in_dim, out_dim):
    k1, k2, k3 = jax.random.split(key, 3)
    gamma = jnp.ones((in_dim,), jnp.float32)
    beta = jnp.zeros((in_dim,), jnp.float32)
    # SplineLinear: trunc_normal(std=0.1), no bias.
    w_spline = 0.1 * jax.random.truncated_normal(
        k1, -2.0, 2.0, (out_dim, in_dim * NUM_GRIDS), jnp.float32)
    # base Linear: kaiming-uniform-ish.
    bound = 1.0 / jnp.sqrt(float(in_dim))
    w_base = jax.random.uniform(k2, (out_dim, in_dim), jnp.float32, -bound, bound)
    b_base = jax.random.uniform(k3, (out_dim,), jnp.float32, -bound, bound)
    return (gamma, beta, w_spline, w_base, b_base)


# ------------------------------ pure-JAX reference ----------------------------
def _ref_layer(x, gamma, beta, w_spline, w_base, b_base):
    mean = x.mean(-1, keepdims=True)
    var = ((x - mean) ** 2).mean(-1, keepdims=True)
    ln = (x - mean) / jnp.sqrt(var + LN_EPS) * gamma + beta
    grid = jnp.linspace(GRID_MIN, GRID_MAX, NUM_GRIDS)
    denom = (GRID_MAX - GRID_MIN) / (NUM_GRIDS - 1)
    basis = jnp.exp(-(((ln[..., None] - grid) / denom) ** 2))      # [B, in, G]
    spline = basis.reshape(x.shape[0], -1) @ w_spline.T
    base = jax.nn.silu(x) @ w_base.T + b_base
    return spline + base


def _ref_forward(x, raw_params):
    h = _ref_layer(x, *raw_params["layer0"])
    return _ref_layer(h, *raw_params["layer1"])


# ----------------------------------- main --------------------------------------
if __name__ == "__main__":
    koopman_dim, hidden_dim, latent_dim = 8, 32, 16
    batch = 8

    key = jax.random.PRNGKey(0)
    kx, k0, k1 = jax.random.split(key, 3)
    x = jax.random.normal(kx, (batch, koopman_dim), jnp.float32)
    raw_params = {
        "layer0": init_layer_params(k0, koopman_dim, hidden_dim),
        "layer1": init_layer_params(k1, hidden_dim, latent_dim),
    }

    # One-time parameter preparation (hoisted out of the forward path).
    prepared = prepare_params(raw_params)

    y = parametrization_network_fastkan(x, prepared)
    y = jax.block_until_ready(y)

    y_ref = _ref_forward(x, raw_params)
    assert y.shape == (batch, latent_dim)
    assert jnp.allclose(y, y_ref, atol=5e-4, rtol=5e-4), "mismatch vs pure-JAX reference"

    print("KERNEL_OK")
</pallas_src>

<mosaic_0001>
module attributes {stable_mosaic.version = 11 : i64} {
  func.func @_fused_fastkan_kernel(%arg0: i32, %arg1: memref<8x8xf32, #tpu.memory_space<vmem>>, %arg2: memref<8x64xf32, #tpu.memory_space<vmem>>, %arg3: memref<1x64xf32, #tpu.memory_space<vmem>>, %arg4: memref<64x32xf32, #tpu.memory_space<vmem>>, %arg5: memref<8x32xf32, #tpu.memory_space<vmem>>, %arg6: memref<1x32xf32, #tpu.memory_space<vmem>>, %arg7: memref<32x256xf32, #tpu.memory_space<vmem>>, %arg8: memref<1x256xf32, #tpu.memory_space<vmem>>, %arg9: memref<256x16xf32, #tpu.memory_space<vmem>>, %arg10: memref<32x16xf32, #tpu.memory_space<vmem>>, %arg11: memref<1x16xf32, #tpu.memory_space<vmem>>, %arg12: memref<8x16xf32, #tpu.memory_space<vmem>>) attributes {dimension_semantics = [#tpu.dimension_semantics<parallel>], iteration_bounds = array<i64: 1>, scalar_prefetch = 0 : i64, scratch_operands = 0 : i64, tpu.core_type = #tpu.core_type<tc>, window_params = [{transform_indices = @transform_0, window_bounds = array<i64: 8, 8>}, {pipeline_mode = #tpu.pipeline_mode<synchronous>, transform_indices = @transform_1, window_bounds = array<i64: 8, 64>}, {pipeline_mode = #tpu.pipeline_mode<synchronous>, transform_indices = @transform_2, window_bounds = array<i64: 1, 64>}, {pipeline_mode = #tpu.pipeline_mode<synchronous>, transform_indices = @transform_3, window_bounds = array<i64: 64, 32>}, {pipeline_mode = #tpu.pipeline_mode<synchronous>, transform_indices = @transform_4, window_bounds = array<i64: 8, 32>}, {pipeline_mode = #tpu.pipeline_mode<synchronous>, transform_indices = @transform_5, window_bounds = array<i64: 1, 32>}, {pipeline_mode = #tpu.pipeline_mode<synchronous>, transform_indices = @transform_6, window_bounds = array<i64: 32, 256>}, {pipeline_mode = #tpu.pipeline_mode<synchronous>, transform_indices = @transform_7, window_bounds = array<i64: 1, 256>}, {pipeline_mode = #tpu.pipeline_mode<synchronous>, transform_indices = @transform_8, window_bounds = array<i64: 256, 16>}, {pipeline_mode = #tpu.pipeline_mode<synchronous>, transform_indices = @transform_9, window_bounds = array<i64: 32, 16>}, {pipeline_mode = #tpu.pipeline_mode<synchronous>, transform_indices = @transform_10, window_bounds = array<i64: 1, 16>}, {transform_indices = @transform_11, window_bounds = array<i64: 8, 16>}]} {
    %c0 = arith.constant 0 : index
    %c0_0 = arith.constant 0 : index
    %0 = vector.load %arg1[%c0, %c0_0] : memref<8x8xf32, #tpu.memory_space<vmem>>, vector<8x8xf32>
    %cst = arith.constant dense<0.000000e+00> : vector<8xf32>
    %1 = vector.multi_reduction <add>, %0, %cst [1] : vector<8x8xf32> to vector<8xf32>
    %2 = vector.shape_cast %1 : vector<8xf32> to vector<8x1xf32>
    %cst_1 = arith.constant 8.000000e+00 : f32
    %3 = vector.broadcast %cst_1 : f32 to vector<8x1xf32>
    %4 = arith.divf %2, %3 : vector<8x1xf32>
    %5 = vector.broadcast %4 : vector<8x1xf32> to vector<8x8xf32>
    %6 = arith.subf %0, %5 : vector<8x8xf32>
    %7 = arith.mulf %6, %6 : vector<8x8xf32>
    %cst_2 = arith.constant dense<0.000000e+00> : vector<8xf32>
    %8 = vector.multi_reduction <add>, %7, %cst_2 [1] : vector<8x8xf32> to vector<8xf32>
    %9 = vector.shape_cast %8 : vector<8xf32> to vector<8x1xf32>
    %cst_3 = arith.constant 8.000000e+00 : f32
    %10 = vector.broadcast %cst_3 : f32 to vector<8x1xf32>
    %11 = arith.divf %9, %10 : vector<8x1xf32>
    %cst_4 = arith.constant 9.99999974E-6 : f32
    %12 = vector.broadcast %cst_4 : f32 to vector<8x1xf32>
    %13 = arith.addf %11, %12 : vector<8x1xf32>
    %14 = math.rsqrt %13 : vector<8x1xf32>
    %15 = vector.broadcast %14 : vector<8x1xf32> to vector<8x8xf32>
    %16 = arith.mulf %6, %15 : vector<8x8xf32>
    %c0_5 = arith.constant 0 : index
    %c0_6 = arith.constant 0 : index
    %17 = vector.load %arg2[%c0_5, %c0_6] : memref<8x64xf32, #tpu.memory_space<vmem>>, vector<8x64xf32>
    %cst_7 = arith.constant dense<0.000000e+00> : vector<8x64xf32>
    %18 = tpu.matmul %16, %17, %cst_7 {dimension_numbers = #tpu.dot_dimension_numbers<[1], [0], [0], [1], [0, 0, 1, 1], [], []>} : vector<8x8xf32>, vector<8x64xf32>, vector<8x64xf32> -> vector<8x64xf32>
    %c0_8 = arith.constant 0 : index
    %c0_9 = arith.constant 0 : index
    %19 = vector.load %arg3[%c0_8, %c0_9] : memref<1x64xf32, #tpu.memory_space<vmem>>, vector<1x64xf32>
    %20 = vector.broadcast %19 : vector<1x64xf32> to vector<8x64xf32>
    %21 = arith.addf %18, %20 : vector<8x64xf32>
    %22 = arith.mulf %21, %21 : vector<8x64xf32>
    %cst_10 = arith.constant 0.000000e+00 : f32
    %23 = vector.broadcast %cst_10 : f32 to vector<8x64xf32>
    %24 = arith.subf %23, %22 : vector<8x64xf32>
    %25 = math.exp %24 : vector<8x64xf32>
    %26 = arith.negf %0 : vector<8x8xf32>
    %27 = math.exp %26 : vector<8x8xf32>
    %cst_11 = arith.constant 1.000000e+00 : f32
    %28 = vector.broadcast %cst_11 : f32 to vector<8x8xf32>
    %29 = arith.addf %28, %27 : vector<8x8xf32>
    %30 = arith.divf %28, %29 : vector<8x8xf32>
    %31 = arith.mulf %0, %30 : vector<8x8xf32>
    %c0_12 = arith.constant 0 : index
    %c0_13 = arith.constant 0 : index
    %32 = vector.load %arg4[%c0_12, %c0_13] : memref<64x32xf32, #tpu.memory_space<vmem>>, vector<64x32xf32>
    %cst_14 = arith.constant dense<0.000000e+00> : vector<8x32xf32>
    %33 = tpu.matmul %25, %32, %cst_14 {dimension_numbers = #tpu.dot_dimension_numbers<[1], [0], [0], [1], [0, 0, 1, 1], [], []>} : vector<8x64xf32>, vector<64x32xf32>, vector<8x32xf32> -> vector<8x32xf32>
    %c0_15 = arith.constant 0 : index
    %c0_16 = arith.constant 0 : index
    %34 = vector.load %arg5[%c0_15, %c0_16] : memref<8x32xf32, #tpu.memory_space<vmem>>, vector<8x32xf32>
    %cst_17 = arith.constant dense<0.000000e+00> : vector<8x32xf32>
    %35 = tpu.matmul %31, %34, %cst_17 {dimension_numbers = #tpu.dot_dimension_numbers<[1], [0], [0], [1], [0, 0, 1, 1], [], []>} : vector<8x8xf32>, vector<8x32xf32>, vector<8x32xf32> -> vector<8x32xf32>
    %36 = arith.addf %33, %35 : vector<8x32xf32>
    %c0_18 = arith.constant 0 : index
    %c0_19 = arith.constant 0 : index
    %37 = vector.load %arg6[%c0_18, %c0_19] : memref<1x32xf32, #tpu.memory_space<vmem>>, vector<1x32xf32>
    %38 = vector.broadcast %37 : vector<1x32xf32> to vector<8x32xf32>
    %39 = arith.addf %36, %38 : vector<8x32xf32>
    %cst_20 = arith.constant dense<0.000000e+00> : vector<8xf32>
    %40 = vector.multi_reduction <add>, %39, %cst_20 [1] : vector<8x32xf32> to vector<8xf32>
    %41 = vector.shape_cast %40 : vector<8xf32> to vector<8x1xf32>
    %cst_21 = arith.constant 3.200000e+01 : f32
    %42 = vector.broadcast %cst_21 : f32 to vector<8x1xf32>
    %43 = arith.divf %41, %42 : vector<8x1xf32>
    %44 = vector.broadcast %43 : vector<8x1xf32> to vector<8x32xf32>
    %45 = arith.subf %39, %44 : vector<8x32xf32>
    %46 = arith.mulf %45, %45 : vector<8x32xf32>
    %cst_22 = arith.constant dense<0.000000e+00> : vector<8xf32>
    %47 = vector.multi_reduction <add>, %46, %cst_22 [1] : vector<8x32xf32> to vector<8xf32>
    %48 = vector.shape_cast %47 : vector<8xf32> to vector<8x1xf32>
    %cst_23 = arith.constant 3.200000e+01 : f32
    %49 = vector.broadcast %cst_23 : f32 to vector<8x1xf32>
    %50 = arith.divf %48, %49 : vector<8x1xf32>
    %cst_24 = arith.constant 9.99999974E-6 : f32
    %51 = vector.broadcast %cst_24 : f32 to vector<8x1xf32>
    %52 = arith.addf %50, %51 : vector<8x1xf32>
    %53 = math.rsqrt %52 : vector<8x1xf32>
    %54 = vector.broadcast %53 : vector<8x1xf32> to vector<8x32xf32>
    %55 = arith.mulf %45, %54 : vector<8x32xf32>
    %c0_25 = arith.constant 0 : index
    %c0_26 = arith.constant 0 : index
    %56 = vector.load %arg7[%c0_25, %c0_26] : memref<32x256xf32, #tpu.memory_space<vmem>>, vector<32x256xf32>
    %cst_27 = arith.constant dense<0.000000e+00> : vector<8x256xf32>
    %57 = tpu.matmul %55, %56, %cst_27 {dimension_numbers = #tpu.dot_dimension_numbers<[1], [0], [0], [1], [0, 0, 1, 1], [], []>} : vector<8x32xf32>, vector<32x256xf32>, vector<8x256xf32> -> vector<8x256xf32>
    %c0_28 = arith.constant 0 : index
    %c0_29 = arith.constant 0 : index
    %58 = vector.load %arg8[%c0_28, %c0_29] : memref<1x256xf32, #tpu.memory_space<vmem>>, vector<1x256xf32>
    %59 = vector.broadcast %58 : vector<1x256xf32> to vector<8x256xf32>
    %60 = arith.addf %57, %59 : vector<8x256xf32>
    %61 = arith.mulf %60, %60 : vector<8x256xf32>
    %cst_30 = arith.constant 0.000000e+00 : f32
    %62 = vector.broadcast %cst_30 : f32 to vector<8x256xf32>
    %63 = arith.subf %62, %61 : vector<8x256xf32>
    %64 = math.exp %63 : vector<8x256xf32>
    %65 = arith.negf %39 : vector<8x32xf32>
    %66 = math.exp %65 : vector<8x32xf32>
    %cst_31 = arith.constant 1.000000e+00 : f32
    %67 = vector.broadcast %cst_31 : f32 to vector<8x32xf32>
    %68 = arith.addf %67, %66 : vector<8x32xf32>
    %69 = arith.divf %67, %68 : vector<8x32xf32>
    %70 = arith.mulf %39, %69 : vector<8x32xf32>
    %c0_32 = arith.constant 0 : index
    %c0_33 = arith.constant 0 : index
    %71 = vector.load %arg9[%c0_32, %c0_33] : memref<256x16xf32, #tpu.memory_space<vmem>>, vector<256x16xf32>
    %cst_34 = arith.constant dense<0.000000e+00> : vector<8x16xf32>
    %72 = tpu.matmul %64, %71, %cst_34 {dimension_numbers = #tpu.dot_dimension_numbers<[1], [0], [0], [1], [0, 0, 1, 1], [], []>} : vector<8x256xf32>, vector<256x16xf32>, vector<8x16xf32> -> vector<8x16xf32>
    %c0_35 = arith.constant 0 : index
    %c0_36 = arith.constant 0 : index
    %73 = vector.load %arg10[%c0_35, %c0_36] : memref<32x16xf32, #tpu.memory_space<vmem>>, vector<32x16xf32>
    %cst_37 = arith.constant dense<0.000000e+00> : vector<8x16xf32>
    %74 = tpu.matmul %70, %73, %cst_37 {dimension_numbers = #tpu.dot_dimension_numbers<[1], [0], [0], [1], [0, 0, 1, 1], [], []>} : vector<8x32xf32>, vector<32x16xf32>, vector<8x16xf32> -> vector<8x16xf32>
    %75 = arith.addf %72, %74 : vector<8x16xf32>
    %c0_38 = arith.constant 0 : index
    %c0_39 = arith.constant 0 : index
    %76 = vector.load %arg11[%c0_38, %c0_39] : memref<1x16xf32, #tpu.memory_space<vmem>>, vector<1x16xf32>
    %77 = vector.broadcast %76 : vector<1x16xf32> to vector<8x16xf32>
    %78 = arith.addf %75, %77 : vector<8x16xf32>
    %c0_40 = arith.constant 0 : index
    %c0_41 = arith.constant 0 : index
    %79 = vector.load %arg12[%c0_40, %c0_41] : memref<8x16xf32, #tpu.memory_space<vmem>>, vector<8x16xf32>
    tpu.vector_store %arg12[%c0_40, %c0_41], %78 {strides = array<i32>} : memref<8x16xf32, #tpu.memory_space<vmem>>, vector<8x16xf32>,
    return
  }
  func.func @transform_0(%arg0: i32) -> (i32, i32) {
    %c0_i32 = arith.constant 0 : i32
    %c0_i32_0 = arith.constant 0 : i32
    return %arg0, %c0_i32 : i32, i32
  }
  func.func @transform_1(%arg0: i32) -> (i32, i32) {
    %c0_i32 = arith.constant 0 : i32
    %c0_i32_0 = arith.constant 0 : i32
    %c0_i32_1 = arith.constant 0 : i32
    return %c0_i32, %c0_i32_0 : i32, i32
  }
  func.func @transform_2(%arg0: i32) -> (i32, i32) {
    %c0_i32 = arith.constant 0 : i32
    %c0_i32_0 = arith.constant 0 : i32
    %c0_i32_1 = arith.constant 0 : i32
    return %c0_i32, %c0_i32_0 : i32, i32
  }
  func.func @transform_3(%arg0: i32) -> (i32, i32) {
    %c0_i32 = arith.constant 0 : i32
    %c0_i32_0 = arith.constant 0 : i32
    %c0_i32_1 = arith.constant 0 : i32
    return %c0_i32, %c0_i32_0 : i32, i32
  }
  func.func @transform_4(%arg0: i32) -> (i32, i32) {
    %c0_i32 = arith.constant 0 : i32
    %c0_i32_0 = arith.constant 0 : i32
    %c0_i32_1 = arith.constant 0 : i32
    return %c0_i32, %c0_i32_0 : i32, i32
  }
  func.func @transform_5(%arg0: i32) -> (i32, i32) {
    %c0_i32 = arith.constant 0 : i32
    %c0_i32_0 = arith.constant 0 : i32
    %c0_i32_1 = arith.constant 0 : i32
    return %c0_i32, %c0_i32_0 : i32, i32
  }
  func.func @transform_6(%arg0: i32) -> (i32, i32) {
    %c0_i32 = arith.constant 0 : i32
    %c0_i32_0 = arith.constant 0 : i32
    %c0_i32_1 = arith.constant 0 : i32
    return %c0_i32, %c0_i32_0 : i32, i32
  }
  func.func @transform_7(%arg0: i32) -> (i32, i32) {
    %c0_i32 = arith.constant 0 : i32
    %c0_i32_0 = arith.constant 0 : i32
    %c0_i32_1 = arith.constant 0 : i32
    return %c0_i32, %c0_i32_0 : i32, i32
  }
  func.func @transform_8(%arg0: i32) -> (i32, i32) {
    %c0_i32 = arith.constant 0 : i32
    %c0_i32_0 = arith.constant 0 : i32
    %c0_i32_1 = arith.constant 0 : i32
    return %c0_i32, %c0_i32_0 : i32, i32
  }
  func.func @transform_9(%arg0: i32) -> (i32, i32) {
    %c0_i32 = arith.constant 0 : i32
    %c0_i32_0 = arith.constant 0 : i32
    %c0_i32_1 = arith.constant 0 : i32
    return %c0_i32, %c0_i32_0 : i32, i32
  }
  func.func @transform_10(%arg0: i32) -> (i32, i32) {
    %c0_i32 = arith.constant 0 : i32
    %c0_i32_0 = arith.constant 0 : i32
    %c0_i32_1 = arith.constant 0 : i32
    return %c0_i32, %c0_i32_0 : i32, i32
  }
  func.func @transform_11(%arg0: i32) -> (i32, i32) {
    %c0_i32 = arith.constant 0 : i32
    %c0_i32_0 = arith.constant 0 : i32
    return %arg0, %c0_i32 : i32, i32
  }
}

</mosaic_0001>

<llo_original>
// kernel: tpu_custom_call.1
$region0: #{tpu_custom_call.1}
  #allocation0 [shape = 'u32[]', space=smem, size = 0x4, offset = 0x4, fixed_abs, tag = 'smem constant byte address 0x4 - core index']
  #allocation1 [shape = 'u32[144,128]{1,0:T(1,128)}', space=vmem, size = 0x12000, scoped, tag = 'internal scratch']
  %s0 = inlined_call_operand.vmem [shape: f32[8,8], index: 0, kind: input, shape index: {}]
  %s1 = inlined_call_operand.vmem [shape: f32[8,64], index: 1, kind: input, shape index: {}]
  %s2 = inlined_call_operand.vmem [shape: f32[1,64], index: 2, kind: input, shape index: {}]
  %s3 = inlined_call_operand.vmem [shape: f32[64,32], index: 3, kind: input, shape index: {}]
  %s4 = inlined_call_operand.vmem [shape: f32[8,32], index: 4, kind: input, shape index: {}]
  %s5 = inlined_call_operand.vmem [shape: f32[1,32], index: 5, kind: input, shape index: {}]
  %s6 = inlined_call_operand.vmem [shape: f32[32,256], index: 6, kind: input, shape index: {}]
  %s7 = inlined_call_operand.vmem [shape: f32[1,256], index: 7, kind: input, shape index: {}]
  %s8 = inlined_call_operand.vmem [shape: f32[256,16], index: 8, kind: input, shape index: {}]
  %s9 = inlined_call_operand.vmem [shape: f32[32,16], index: 9, kind: input, shape index: {}]
  %s10 = inlined_call_operand.vmem [shape: f32[1,16], index: 10, kind: input, shape index: {}]
  %s11 = inlined_call_operand.hbm [shape: f32[8,16], index: 11, kind: output, shape index: {}]
  %s12 = sld [smem:[#allocation0]]
  $region54: #{tpu_custom_call.1} parent=0
    _
  %s14 = ssub.s32 1, %s12
  %s15 = scalar_select 0, %s14, %s12
  $region1: #{tpu_custom_call.1} parent=0
    #allocation2 [shape = 'u8[4096]{0}', space=vmem, size = 0x1000, scoped, tag = 'output window, operand 0, single buffered']
    #allocation3 [shape = 's32[1]{0}', space=sflag, size = 0x4, scoped, tag = 'scoped memory for tpu_custom_call.1']
    %16 = vsyncpa [#allocation3], 0
    // Predicated region
    $region2: #{tpu_custom_call.1} parent=1 // pred_check
      _
    $region3: #{tpu_custom_call.1} parent=1 // pred_check_branch
      %18 = sbr.rel (0) target = $region5
    $region4: #{tpu_custom_call.1} parent=1 // pred_region
      _
    $region5: #{tpu_custom_call.1} parent=1 // pred_fallthru
      _
    // Predicated region
    $region6: #{tpu_custom_call.1} parent=1 // pred_check
      _
    $region7: #{tpu_custom_call.1} parent=1 // pred_check_branch
      %20 = sbr.rel (0) target = $region9
    $region8: #{tpu_custom_call.1} parent=1 // pred_region
      _
    $region9: #{tpu_custom_call.1} parent=1 // pred_fallthru
      _
    // Predicated region
    $region10: #{tpu_custom_call.1} parent=1 // pred_check
      _
    $region11: #{tpu_custom_call.1} parent=1 // pred_check_branch
      %22 = sbr.rel (0) target = $region13
    $region12: #{tpu_custom_call.1} parent=1 // pred_region
      _
    $region13: #{tpu_custom_call.1} parent=1 // pred_fallthru
      _
    // Predicated region
    $region14: #{tpu_custom_call.1} parent=1 // pred_check
      _
    $region15: #{tpu_custom_call.1} parent=1 // pred_check_branch
      %24 = sbr.rel (0) target = $region17
    $region16: #{tpu_custom_call.1} parent=1 // pred_region
      _
    $region17: #{tpu_custom_call.1} parent=1 // pred_fallthru
      _
    // Predicated region
    $region18: #{tpu_custom_call.1} parent=1 // pred_check
      _
    $region19: #{tpu_custom_call.1} parent=1 // pred_check_branch
      %26 = sbr.rel (0) target = $region21
    $region20: #{tpu_custom_call.1} parent=1 // pred_region
      _
    $region21: #{tpu_custom_call.1} parent=1 // pred_fallthru
      _
    // Predicated region
    $region22: #{tpu_custom_call.1} parent=1 // pred_check
      _
    $region23: #{tpu_custom_call.1} parent=1 // pred_check_branch
      %28 = sbr.rel (0) target = $region25
    $region24: #{tpu_custom_call.1} parent=1 // pred_region
      _
    $region25: #{tpu_custom_call.1} parent=1 // pred_fallthru
      _
    // Predicated region
    $region26: #{tpu_custom_call.1} parent=1 // pred_check
      _
    $region27: #{tpu_custom_call.1} parent=1 // pred_check_branch
      %30 = sbr.rel (0) target = $region29
    $region28: #{tpu_custom_call.1} parent=1 // pred_region
      _
    $region29: #{tpu_custom_call.1} parent=1 // pred_fallthru
      _
    // Predicated region
    $region30: #{tpu_custom_call.1} parent=1 // pred_check
      _
    $region31: #{tpu_custom_call.1} parent=1 // pred_check_branch
      %32 = sbr.rel (0) target = $region33
    $region32: #{tpu_custom_call.1} parent=1 // pred_region
      _
    $region33: #{tpu_custom_call.1} parent=1 // pred_fallthru
      _
    // Predicated region
    $region34: #{tpu_custom_call.1} parent=1 // pred_check
      _
    $region35: #{tpu_custom_call.1} parent=1 // pred_check_branch
      %34 = sbr.rel (0) target = $region37
    $region36: #{tpu_custom_call.1} parent=1 // pred_region
      _
    $region37: #{tpu_custom_call.1} parent=1 // pred_fallthru
      _
    // Predicated region
    $region38: #{tpu_custom_call.1} parent=1 // pred_check
      _
    $region39: #{tpu_custom_call.1} parent=1 // pred_check_branch
      %36 = sbr.rel (0) target = $region41
    $region40: #{tpu_custom_call.1} parent=1 // pred_region
      _
    $region41: #{tpu_custom_call.1} parent=1 // pred_fallthru
      _
    // Predicated region
    $region42: #{tpu_custom_call.1} parent=1 // pred_check
      _
    $region43: #{tpu_custom_call.1} parent=1 // pred_check_branch
      %38 = sbr.rel (0) target = $region45
    $region44: #{tpu_custom_call.1} parent=1 // pred_region
      _
    $region45: #{tpu_custom_call.1} parent=1 // pred_fallthru
      _
    %v39 = vld [vmem:[%s0] sm:$0xff]
    %vm40 = vcmask 64512
    %v41 = vsel %vm40, %v39, 0.0
    %42 = vadd.xlane.f32.xlu0 %v41
    %v43 = vpop.xlane.xlu0 %42
    %v44 = vrcp.pop 8.0
    %v45 = vmul.f32 %v43, %v44
    %v46 = vsub.f32 %v39, %v45
    %v47 = vmul.f32 %v46, %v46
    %v48 = vsel %vm40, %v47, 0.0
    %49 = vadd.xlane.f32.xlu0 %v48
    %v50 = vpop.xlane.xlu0 %49
    %v51 = vmul.f32 %v50, %v44
    %v52 = vadd.f32 %v51, 1e-05
    %v53 = vrsqrt.pop %v52
    %v54 = vmul.f32 %v46, %v53
    %v55 = vld [vmem:[%s1] sm:$0xff]
    %v56 = vld [vmem:[%s2] sm:$0x1]
    %v58 = vlaneseq
    %v59 = vshrl.u32 %v58, 7
    %v60 = vsub.s32 0, %v59
    %v61 = vrot.slane %v56, %v60
    %v64 = vsel %vm40, %v54, 0
    %66 = vmatprep.subr.mxu0 0.0
    %67 = vmatpush1.msra.mxu0 %v55
    %68 = vmatprep.subr.mxu0 0.0
    %69 = vmatpush1.msra.mxu0 0.0
    %70 = vmatprep.subr.mxu0 0.0
    %71 = vmatpush1.msra.mxu0 0.0
    %72 = vmatprep.subr.mxu0 0.0
    %73 = vmatpush1.msra.mxu0 0.0
    %74 = vmatprep.subr.mxu0 0.0
    %75 = vmatpush1.msra.mxu0 0.0
    %76 = vmatprep.subr.mxu0 0.0
    %77 = vmatpush1.msra.mxu0 0.0
    %78 = vmatprep.subr.mxu0 0.0
    %79 = vmatpush1.msra.mxu0 0.0
    %80 = vmatprep.subr.mxu0 0.0
    %81 = vmatpush1.msra.mxu0 0.0
    %82 = vmatprep.subr.mxu0 0.0
    %83 = vmatpush1.msra.mxu0 0.0
    %84 = vmatprep.subr.mxu0 0.0
    %85 = vmatpush1.msra.mxu0 0.0
    %86 = vmatprep.subr.mxu0 0.0
    %87 = vmatpush1.msra.mxu0 0.0
    %88 = vmatprep.subr.mxu0 0.0
    %89 = vmatpush1.msra.mxu0 0.0
    %90 = vmatprep.subr.mxu0 0.0
    %91 = vmatpush1.msra.mxu0 0.0
    %92 = vmatprep.subr.mxu0 0.0
    %93 = vmatpush1.msra.mxu0 0.0
    %94 = vmatprep.subr.mxu0 0.0
    %95 = vmatpush1.msra.mxu0 0.0
    %96 = vmatprep.subr.mxu0 0.0
    %97 = vmatpush1.msra.mxu0 0.0
    %98 = vmatprep.subr.mxu0 0.0
    %99 = vmatpush1.msra.mxu0 0.0
    %100 = vmatprep.subr.mxu0 0.0
    %101 = vmatpush1.msra.mxu0 0.0
    %102 = vmatprep.subr.mxu0 0.0
    %103 = vmatpush1.msra.mxu0 0.0
    %104 = vmatprep.subr.mxu0 0.0
    %105 = vmatpush1.msra.mxu0 0.0
    %106 = vmatprep.subr.mxu0 0.0
    %107 = vmatpush1.msra.mxu0 0.0
    %108 = vmatprep.subr.mxu0 0.0
    %109 = vmatpush1.msra.mxu0 0.0
    %110 = vmatprep.subr.mxu0 0.0
    %111 = vmatpush1.msra.mxu0 0.0
    %112 = vmatprep.subr.mxu0 0.0
    %113 = vmatpush1.msra.mxu0 0.0
    %114 = vmatprep.subr.mxu0 0.0
    %115 = vmatpush1.msra.mxu0 0.0
    %116 = vmatprep.subr.mxu0 0.0
    %117 = vmatpush1.msra.mxu0 0.0
    %118 = vmatprep.subr.mxu0 0.0
    %119 = vmatpush1.msra.mxu0 0.0
    %120 = vmatprep.subr.mxu0 0.0
    %121 = vmatpush1.msra.mxu0 0.0
    %122 = vmatprep.subr.mxu0 0.0
    %123 = vmatpush1.msra.mxu0 0.0
    %124 = vmatprep.subr.mxu0 0.0
    %125 = vmatpush1.msra.mxu0 0.0
    %126 = vmatprep.subr.mxu0 0.0
    %127 = vmatpush1.msra.mxu0 0.0
    %128 = vmatprep.subr.mxu0 0.0
    %129 = vmatpush1.msra.mxu0 0.0
    %130 = vmatprep.mubr.f32.mxu0 0.0
    %131 = vmatmul.mubr.f32.gmra.mrb[0].mxu0 %v64
    %v132 = vpop.f32.mrb[0].mxu0
    %v133 = vadd.f32 %v61, %v132
    %v134 = vpop.f32.mrb[0].mxu0
    %135 = vdwg.mxu0
    %v136 = vmul.f32 %v133, %v133
    %v137 = vsub.f32 0.0, %v136
    %v138 = vmul.f32 %v137, 1.442695
    %v139 = vpow.pop %v138
    %v140 = vxor.u32 %v39, 2147483648
    %v141 = vmul.f32 %v140, 1.442695
    %v142 = vpow.pop %v141
    %v143 = vadd.f32 %v142, 1.0
    %v144 = vrcp.pop %v143
    %v145 = vmul.f32 1.0, %v144
    %v146 = vmul.f32 %v39, %v145
    %v147 = vld [vmem:[%s3] sm:$0xff]
    %v148 = vld [vmem:[%s3 + $0x8] sm:$0xff]
    %v149 = vld [vmem:[%s3 + $0x10] sm:$0xff]
    %v150 = vld [vmem:[%s3 + $0x18] sm:$0xff]
    %v151 = vld [vmem:[%s3 + $0x20] sm:$0xff]
    %v152 = vld [vmem:[%s3 + $0x28] sm:$0xff]
    %v153 = vld [vmem:[%s3 + $0x30] sm:$0xff]
    %v154 = vld [vmem:[%s3 + $0x38] sm:$0xff]
    %v155 = vld [vmem:[%s4] sm:$0xff]
    %v157 = vsel %vm40, %v146, 0
    %159 = vmatprep.subr.mxu0 0.0
    %160 = vmatpush1.msra.mxu0 %v155
    %161 = vmatprep.subr.mxu0 0.0
    %162 = vmatpush1.msra.mxu0 0.0
    %163 = vmatprep.subr.mxu0 0.0
    %164 = vmatpush1.msra.mxu0 0.0
    %165 = vmatprep.subr.mxu0 0.0
    %166 = vmatpush1.msra.mxu0 0.0
    %167 = vmatprep.subr.mxu0 0.0
    %168 = vmatpush1.msra.mxu0 0.0
    %169 = vmatprep.subr.mxu0 0.0
    %170 = vmatpush1.msra.mxu0 0.0
    %171 = vmatprep.subr.mxu0 0.0
    %172 = vmatpush1.msra.mxu0 0.0
    %173 = vmatprep.subr.mxu0 0.0
    %174 = vmatpush1.msra.mxu0 0.0
    %175 = vmatprep.subr.mxu0 0.0
    %176 = vmatpush1.msra.mxu0 0.0
    %177 = vmatprep.subr.mxu0 0.0
    %178 = vmatpush1.msra.mxu0 0.0
    %179 = vmatprep.subr.mxu0 0.0
    %180 = vmatpush1.msra.mxu0 0.0
    %181 = vmatprep.subr.mxu0 0.0
    %182 = vmatpush1.msra.mxu0 0.0
    %183 = vmatprep.subr.mxu0 0.0
    %184 = vmatpush1.msra.mxu0 0.0
    %185 = vmatprep.subr.mxu0 0.0
    %186 = vmatpush1.msra.mxu0 0.0
    %187 = vmatprep.subr.mxu0 0.0
    %188 = vmatpush1.msra.mxu0 0.0
    %189 = vmatprep.subr.mxu0 0.0
    %190 = vmatpush1.msra.mxu0 0.0
    %191 = vmatprep.subr.mxu0 0.0
    %192 = vmatpush1.msra.mxu0 0.0
    %193 = vmatprep.subr.mxu0 0.0
    %194 = vmatpush1.msra.mxu0 0.0
    %195 = vmatprep.subr.mxu0 0.0
    %196 = vmatpush1.msra.mxu0 0.0
    %197 = vmatprep.subr.mxu0 0.0
    %198 = vmatpush1.msra.mxu0 0.0
    %199 = vmatprep.subr.mxu0 0.0
    %200 = vmatpush1.msra.mxu0 0.0
    %201 = vmatprep.subr.mxu0 0.0
    %202 = vmatpush1.msra.mxu0 0.0
    %203 = vmatprep.subr.mxu0 0.0
    %204 = vmatpush1.msra.mxu0 0.0
    %205 = vmatprep.subr.mxu0 0.0
    %206 = vmatpush1.msra.mxu0 0.0
    %207 = vmatprep.subr.mxu0 0.0
    %208 = vmatpush1.msra.mxu0 0.0
    %209 = vmatprep.subr.mxu0 0.0
    %210 = vmatpush1.msra.mxu0 0.0
    %211 = vmatprep.subr.mxu0 0.0
    %212 = vmatpush1.msra.mxu0 0.0
    %213 = vmatprep.subr.mxu0 0.0
    %214 = vmatpush1.msra.mxu0 0.0
    %215 = vmatprep.subr.mxu0 0.0
    %216 = vmatpush1.msra.mxu0 0.0
    %217 = vmatprep.subr.mxu0 0.0
    %218 = vmatpush1.msra.mxu0 0.0
    %219 = vmatprep.subr.mxu0 0.0
    %220 = vmatpush1.msra.mxu0 0.0
    %221 = vmatprep.subr.mxu0 0.0
    %222 = vmatpush1.msra.mxu0 0.0
    %223 = vmatprep.mubr.f32.mxu0 0.0
    %224 = vmatmul.mubr.f32.gmra.mrb[0].mxu0 %v157
    %v225 = vpop.f32.mrb[0].mxu0
    %v226 = vadd.f32 0.0, %v225
    %v227 = vpop.f32.mrb[0].mxu0
    %228 = vdwg.mxu0
    %vm229 = vcmask 523264
    %v231 = vsel %vm229, %v139, 0
    %233 = vmatprep.subr.mxu0 0.0
    %234 = vmatpush1.msra.mxu0 %v147
    %235 = vmatprep.subr.mxu0 0.0
    %236 = vmatpush1.msra.mxu0 %v148
    %237 = vmatprep.subr.mxu0 0.0
    %238 = vmatpush1.msra.mxu0 %v149
    %239 = vmatprep.subr.mxu0 0.0
    %240 = vmatpush1.msra.mxu0 %v150
    %241 = vmatprep.subr.mxu0 0.0
    %242 = vmatpush1.msra.mxu0 %v151
    %243 = vmatprep.subr.mxu0 0.0
    %244 = vmatpush1.msra.mxu0 %v152
    %245 = vmatprep.subr.mxu0 0.0
    %246 = vmatpush1.msra.mxu0 %v153
    %247 = vmatprep.subr.mxu0 0.0
    %248 = vmatpush1.msra.mxu0 %v154
    %249 = vmatprep.subr.mxu0 0.0
    %250 = vmatpush1.msra.mxu0 0.0
    %251 = vmatprep.subr.mxu0 0.0
    %252 = vmatpush1.msra.mxu0 0.0
    %253 = vmatprep.subr.mxu0 0.0
    %254 = vmatpush1.msra.mxu0 0.0
    %255 = vmatprep.subr.mxu0 0.0
    %256 = vmatpush1.msra.mxu0 0.0
    %257 = vmatprep.subr.mxu0 0.0
    %258 = vmatpush1.msra.mxu0 0.0
    %259 = vmatprep.subr.mxu0 0.0
    %260 = vmatpush1.msra.mxu0 0.0
    %261 = vmatprep.subr.mxu0 0.0
    %262 = vmatpush1.msra.mxu0 0.0
    %263 = vmatprep.subr.mxu0 0.0
    %264 = vmatpush1.msra.mxu0 0.0
    %265 = vmatprep.subr.mxu0 0.0
    %266 = vmatpush1.msra.mxu0 0.0
    %267 = vmatprep.subr.mxu0 0.0
    %268 = vmatpush1.msra.mxu0 0.0
    %269 = vmatprep.subr.mxu0 0.0
    %270 = vmatpush1.msra.mxu0 0.0
    %271 = vmatprep.subr.mxu0 0.0
    %272 = vmatpush1.msra.mxu0 0.0
    %273 = vmatprep.subr.mxu0 0.0
    %274 = vmatpush1.msra.mxu0 0.0
    %275 = vmatprep.subr.mxu0 0.0
    %276 = vmatpush1.msra.mxu0 0.0
    %277 = vmatprep.subr.mxu0 0.0
    %278 = vmatpush1.msra.mxu0 0.0
    %279 = vmatprep.subr.mxu0 0.0
    %280 = vmatpush1.msra.mxu0 0.0
    %281 = vmatprep.subr.mxu0 0.0
    %282 = vmatpush1.msra.mxu0 0.0
    %283 = vmatprep.subr.mxu0 0.0
    %284 = vmatpush1.msra.mxu0 0.0
    %285 = vmatprep.subr.mxu0 0.0
    %286 = vmatpush1.msra.mxu0 0.0
    %287 = vmatprep.subr.mxu0 0.0
    %288 = vmatpush1.msra.mxu0 0.0
    %289 = vmatprep.subr.mxu0 0.0
    %290 = vmatpush1.msra.mxu0 0.0
    %291 = vmatprep.subr.mxu0 0.0
    %292 = vmatpush1.msra.mxu0 0.0
    %293 = vmatprep.subr.mxu0 0.0
    %294 = vmatpush1.msra.mxu0 0.0
    %295 = vmatprep.subr.mxu0 0.0
    %296 = vmatpush1.msra.mxu0 0.0
    %297 = vmatprep.mubr.f32.mxu0 0.0
    %298 = vmatmul.mubr.f32.gmra.mrb[0].mxu0 %v231
    %v299 = vpop.f32.mrb[0].mxu0
    %v300 = vadd.f32 %v226, %v299
    %v301 = vpop.f32.mrb[0].mxu0
    %302 = vdwg.mxu0
    %v303 = vld [vmem:[%s5] sm:$0x1]
    %v305 = vlaneseq
    %v306 = vshrl.u32 %v305, 7
    %v307 = vsub.s32 0, %v306
    %v308 = vrot.slane %v303, %v307
    %v310 = vadd.f32 %v300, %v308
    %vm311 = vcmask 261120
    %v312 = vsel %vm311, %v310, 0.0
    %313 = vadd.xlane.f32.xlu0 %v312
    %v314 = vpop.xlane.xlu0 %313
    %v315 = vrcp.pop 32.0
    %v316 = vmul.f32 %v314, %v315
    %v317 = vsub.f32 %v310, %v316
    %v318 = vmul.f32 %v317, %v317
    %v319 = vsel %vm311, %v318, 0.0
    %320 = vadd.xlane.f32.xlu0 %v319
    %v321 = vpop.xlane.xlu0 %320
    %v322 = vmul.f32 %v321, %v315
    %v323 = vadd.f32 %v322, 1e-05
    %v324 = vrsqrt.pop %v323
    %v325 = vmul.f32 %v317, %v324
    %v326 = vld [vmem:[%s6] sm:$0xff]
    %v327 = vld [vmem:[%s6 + $0x8] sm:$0xff]
    %v328 = vld [vmem:[%s6 + $0x10] sm:$0xff]
    %v329 = vld [vmem:[%s6 + $0x18] sm:$0xff]
    %v330 = vld [vmem:[%s6 + $0x20] sm:$0xff]
    %v331 = vld [vmem:[%s6 + $0x28] sm:$0xff]
    %v332 = vld [vmem:[%s6 + $0x30] sm:$0xff]
    %v333 = vld [vmem:[%s6 + $0x38] sm:$0xff]
    %v334 = vld [vmem:[%s7] sm:$0x3]
    %v336 = vlaneseq
    %v337 = vshrl.u32 %v336, 7
    %v338 = vsub.s32 0, %v337
    %v339 = vrot.slane %v334, %v338
    %v340 = vlaneseq
    %v341 = vshrl.u32 %v340, 7
    %v342 = vsub.s32 1, %v341
    %v343 = vrot.slane %v334, %v342
    %v347 = vsel %vm311, %v325, 0
    %349 = vmatprep.subr.mxu0 %v327
    %350 = vmatpush1.msra.mxu0 %v326
    %351 = vmatprep.subr.mxu0 %v329
    %352 = vmatpush1.msra.mxu0 %v328
    %353 = vmatprep.subr.mxu0 %v331
    %354 = vmatpush1.msra.mxu0 %v330
    %355 = vmatprep.subr.mxu0 %v333
    %356 = vmatpush1.msra.mxu0 %v332
    %357 = vmatprep.subr.mxu0 0.0
    %358 = vmatpush1.msra.mxu0 0.0
    %359 = vmatprep.subr.mxu0 0.0
    %360 = vmatpush1.msra.mxu0 0.0
    %361 = vmatprep.subr.mxu0 0.0
    %362 = vmatpush1.msra.mxu0 0.0
    %363 = vmatprep.subr.mxu0 0.0
    %364 = vmatpush1.msra.mxu0 0.0
    %365 = vmatprep.subr.mxu0 0.0
    %366 = vmatpush1.msra.mxu0 0.0
    %367 = vmatprep.subr.mxu0 0.0
    %368 = vmatpush1.msra.mxu0 0.0
    %369 = vmatprep.subr.mxu0 0.0
    %370 = vmatpush1.msra.mxu0 0.0
    %371 = vmatprep.subr.mxu0 0.0
    %372 = vmatpush1.msra.mxu0 0.0
    %373 = vmatprep.subr.mxu0 0.0
    %374 = vmatpush1.msra.mxu0 0.0
    %375 = vmatprep.subr.mxu0 0.0
    %376 = vmatpush1.msra.mxu0 0.0
    %377 = vmatprep.subr.mxu0 0.0
    %378 = vmatpush1.msra.mxu0 0.0
    %379 = vmatprep.subr.mxu0 0.0
    %380 = vmatpush1.msra.mxu0 0.0
    %381 = vmatprep.subr.mxu0 0.0
    %382 = vmatpush1.msra.mxu0 0.0
    %383 = vmatprep.subr.mxu0 0.0
    %384 = vmatpush1.msra.mxu0 0.0
    %385 = vmatprep.subr.mxu0 0.0
    %386 = vmatpush1.msra.mxu0 0.0
    %387 = vmatprep.subr.mxu0 0.0
    %388 = vmatpush1.msra.mxu0 0.0
    %389 = vmatprep.subr.mxu0 0.0
    %390 = vmatpush1.msra.mxu0 0.0
    %391 = vmatprep.subr.mxu0 0.0
    %392 = vmatpush1.msra.mxu0 0.0
    %393 = vmatprep.subr.mxu0 0.0
    %394 = vmatpush1.msra.mxu0 0.0
    %395 = vmatprep.subr.mxu0 0.0
    %396 = vmatpush1.msra.mxu0 0.0
    %397 = vmatprep.subr.mxu0 0.0
    %398 = vmatpush1.msra.mxu0 0.0
    %399 = vmatprep.subr.mxu0 0.0
    %400 = vmatpush1.msra.mxu0 0.0
    %401 = vmatprep.subr.mxu0 0.0
    %402 = vmatpush1.msra.mxu0 0.0
    %403 = vmatprep.subr.mxu0 0.0
    %404 = vmatpush1.msra.mxu0 0.0
    %405 = vmatprep.subr.mxu0 0.0
    %406 = vmatpush1.msra.mxu0 0.0
    %407 = vmatprep.subr.mxu0 0.0
    %408 = vmatpush1.msra.mxu0 0.0
    %409 = vmatprep.subr.mxu0 0.0
    %410 = vmatpush1.msra.mxu0 0.0
    %411 = vmatprep.subr.mxu0 0.0
    %412 = vmatpush1.msra.mxu0 0.0
    %413 = vmatprep.mubr.f32.mxu0 0.0
    %414 = vmatmul.mubr.f32.gmra.mrb[0].mxu0 %v347
    %v415 = vpop.f32.mrb[0].mxu0
    %v416 = vadd.f32 %v339, %v415
    %v417 = vpop.f32.mrb[0].mxu0
    %v418 = vadd.f32 %v343, %v417
    %419 = vdwg.mxu0
    %v420 = vmul.f32 %v416, %v416
    %v421 = vmul.f32 %v418, %v418
    %v422 = vsub.f32 0.0, %v420
    %v423 = vsub.f32 0.0, %v421
    %v424 = vmul.f32 %v422, 1.442695
    %v425 = vpow.pop %v424
    %v426 = vmul.f32 %v423, 1.442695
    %v427 = vpow.pop %v426
    %v428 = vxor.u32 %v310, 2147483648
    %v429 = vmul.f32 %v428, 1.442695
    %v430 = vpow.pop %v429
    %v431 = vadd.f32 %v430, 1.0
    %v432 = vrcp.pop %v431
    %v433 = vmul.f32 1.0, %v432
    %v434 = vmul.f32 %v310, %v433
    %v435 = vld [vmem:[%s8] sm:$0xff]
    %v436 = vld [vmem:[%s8 + $0x8] sm:$0xff]
    %v437 = vld [vmem:[%s8 + $0x10] sm:$0xff]
    %v438 = vld [vmem:[%s8 + $0x18] sm:$0xff]
    %v439 = vld [vmem:[%s8 + $0x20] sm:$0xff]
    %v440 = vld [vmem:[%s8 + $0x28] sm:$0xff]
    %v441 = vld [vmem:[%s8 + $0x30] sm:$0xff]
    %v442 = vld [vmem:[%s8 + $0x38] sm:$0xff]
    %v443 = vld [vmem:[%s8 + $0x40] sm:$0xff]
    %v444 = vld [vmem:[%s8 + $0x48] sm:$0xff]
    %v445 = vld [vmem:[%s8 + $0x50] sm:$0xff]
    %v446 = vld [vmem:[%s8 + $0x58] sm:$0xff]
    %v447 = vld [vmem:[%s8 + $0x60] sm:$0xff]
    %v448 = vld [vmem:[%s8 + $0x68] sm:$0xff]
    %v449 = vld [vmem:[%s8 + $0x70] sm:$0xff]
    %v450 = vld [vmem:[%s8 + $0x78] sm:$0xff]
    %v451 = vld [vmem:[%s8 + $0x80] sm:$0xff]
    %v452 = vld [vmem:[%s8 + $0x88] sm:$0xff]
    %v453 = vld [vmem:[%s8 + $0x90] sm:$0xff]
    %v454 = vld [vmem:[%s8 + $0x98] sm:$0xff]
    %v455 = vld [vmem:[%s8 + $0xa0] sm:$0xff]
    %v456 = vld [vmem:[%s8 + $0xa8] sm:$0xff]
    %v457 = vld [vmem:[%s8 + $0xb0] sm:$0xff]
    %v458 = vld [vmem:[%s8 + $0xb8] sm:$0xff]
    %v459 = vld [vmem:[%s8 + $0xc0] sm:$0xff]
    %v460 = vld [vmem:[%s8 + $0xc8] sm:$0xff]
    %v461 = vld [vmem:[%s8 + $0xd0] sm:$0xff]
    %v462 = vld [vmem:[%s8 + $0xd8] sm:$0xff]
    %v463 = vld [vmem:[%s8 + $0xe0] sm:$0xff]
    %v464 = vld [vmem:[%s8 + $0xe8] sm:$0xff]
    %v465 = vld [vmem:[%s8 + $0xf0] sm:$0xff]
    %v466 = vld [vmem:[%s8 + $0xf8] sm:$0xff]
    %v467 = vld [vmem:[%s9] sm:$0xff]
    %v468 = vld [vmem:[%s9 + $0x8] sm:$0xff]
    %v469 = vld [vmem:[%s9 + $0x10] sm:$0xff]
    %v470 = vld [vmem:[%s9 + $0x18] sm:$0xff]
    %v472 = vsel %vm311, %v434, 0
    %474 = vmatprep.subr.mxu0 0.0
    %475 = vmatpush1.msra.mxu0 %v467
    %476 = vmatprep.subr.mxu0 0.0
    %477 = vmatpush1.msra.mxu0 %v468
    %478 = vmatprep.subr.mxu0 0.0
    %479 = vmatpush1.msra.mxu0 %v469
    %480 = vmatprep.subr.mxu0 0.0
    %481 = vmatpush1.msra.mxu0 %v470
    %482 = vmatprep.subr.mxu0 0.0
    %483 = vmatpush1.msra.mxu0 0.0
    %484 = vmatprep.subr.mxu0 0.0
    %485 = vmatpush1.msra.mxu0 0.0
    %486 = vmatprep.subr.mxu0 0.0
    %487 = vmatpush1.msra.mxu0 0.0
    %488 = vmatprep.subr.mxu0 0.0
    %489 = vmatpush1.msra.mxu0 0.0
    %490 = vmatprep.subr.mxu0 0.0
    %491 = vmatpush1.msra.mxu0 0.0
    %492 = vmatprep.subr.mxu0 0.0
    %493 = vmatpush1.msra.mxu0 0.0
    %494 = vmatprep.subr.mxu0 0.0
    %495 = vmatpush1.msra.mxu0 0.0
    %496 = vmatprep.subr.mxu0 0.0
    %497 = vmatpush1.msra.mxu0 0.0
    %498 = vmatprep.subr.mxu0 0.0
    %499 = vmatpush1.msra.mxu0 0.0
    %500 = vmatprep.subr.mxu0 0.0
    %501 = vmatpush1.msra.mxu0 0.0
    %502 = vmatprep.subr.mxu0 0.0
    %503 = vmatpush1.msra.mxu0 0.0
    %504 = vmatprep.subr.mxu0 0.0
    %505 = vmatpush1.msra.mxu0 0.0
    %506 = vmatprep.subr.mxu0 0.0
    %507 = vmatpush1.msra.mxu0 0.0
    %508 = vmatprep.subr.mxu0 0.0
    %509 = vmatpush1.msra.mxu0 0.0
    %510 = vmatprep.subr.mxu0 0.0
    %511 = vmatpush1.msra.mxu0 0.0
    %512 = vmatprep.subr.mxu0 0.0
    %513 = vmatpush1.msra.mxu0 0.0
    %514 = vmatprep.subr.mxu0 0.0
    %515 = vmatpush1.msra.mxu0 0.0
    %516 = vmatprep.subr.mxu0 0.0
    %517 = vmatpush1.msra.mxu0 0.0
    %518 = vmatprep.subr.mxu0 0.0
    %519 = vmatpush1.msra.mxu0 0.0
    %520 = vmatprep.subr.mxu0 0.0
    %521 = vmatpush1.msra.mxu0 0.0
    %522 = vmatprep.subr.mxu0 0.0
    %523 = vmatpush1.msra.mxu0 0.0
    %524 = vmatprep.subr.mxu0 0.0
    %525 = vmatpush1.msra.mxu0 0.0
    %526 = vmatprep.subr.mxu0 0.0
    %527 = vmatpush1.msra.mxu0 0.0
    %528 = vmatprep.subr.mxu0 0.0
    %529 = vmatpush1.msra.mxu0 0.0
    %530 = vmatprep.subr.mxu0 0.0
    %531 = vmatpush1.msra.mxu0 0.0
    %532 = vmatprep.subr.mxu0 0.0
    %533 = vmatpush1.msra.mxu0 0.0
    %534 = vmatprep.subr.mxu0 0.0
    %535 = vmatpush1.msra.mxu0 0.0
    %536 = vmatprep.subr.mxu0 0.0
    %537 = vmatpush1.msra.mxu0 0.0
    %538 = vmatprep.mubr.f32.mxu0 0.0
    %539 = vmatmul.mubr.f32.gmra.mrb[0].mxu0 %v472
    %v540 = vpop.f32.mrb[0].mxu0
    %v541 = vadd.f32 0.0, %v540
    %v542 = vpop.f32.mrb[0].mxu0
    %543 = vdwg.mxu0
    %544 = vmatprep.subr.mxu0 0.0
    %545 = vmatpush1.msra.mxu0 %v435
    %546 = vmatprep.subr.mxu0 0.0
    %547 = vmatpush1.msra.mxu0 %v436
    %548 = vmatprep.subr.mxu0 0.0
    %549 = vmatpush1.msra.mxu0 %v437
    %550 = vmatprep.subr.mxu0 0.0
    %551 = vmatpush1.msra.mxu0 %v438
    %552 = vmatprep.subr.mxu0 0.0
    %553 = vmatpush1.msra.mxu0 %v439
    %554 = vmatprep.subr.mxu0 0.0
    %555 = vmatpush1.msra.mxu0 %v440
    %556 = vmatprep.subr.mxu0 0.0
    %557 = vmatpush1.msra.mxu0 %v441
    %558 = vmatprep.subr.mxu0 0.0
    %559 = vmatpush1.msra.mxu0 %v442
    %560 = vmatprep.subr.mxu0 0.0
    %561 = vmatpush1.msra.mxu0 %v443
    %562 = vmatprep.subr.mxu0 0.0
    %563 = vmatpush1.msra.mxu0 %v444
    %564 = vmatprep.subr.mxu0 0.0
    %565 = vmatpush1.msra.mxu0 %v445
    %566 = vmatprep.subr.mxu0 0.0
    %567 = vmatpush1.msra.mxu0 %v446
    %568 = vmatprep.subr.mxu0 0.0
    %569 = vmatpush1.msra.mxu0 %v447
    %570 = vmatprep.subr.mxu0 0.0
    %571 = vmatpush1.msra.mxu0 %v448
    %572 = vmatprep.subr.mxu0 0.0
    %573 = vmatpush1.msra.mxu0 %v449
    %574 = vmatprep.subr.mxu0 0.0
    %575 = vmatpush1.msra.mxu0 %v450
    %576 = vmatprep.subr.mxu0 0.0
    %577 = vmatpush1.msra.mxu0 %v451
    %578 = vmatprep.subr.mxu0 0.0
    %579 = vmatpush1.msra.mxu0 %v452
    %580 = vmatprep.subr.mxu0 0.0
    %581 = vmatpush1.msra.mxu0 %v453
    %582 = vmatprep.subr.mxu0 0.0
    %583 = vmatpush1.msra.mxu0 %v454
    %584 = vmatprep.subr.mxu0 0.0
    %585 = vmatpush1.msra.mxu0 %v455
    %586 = vmatprep.subr.mxu0 0.0
    %587 = vmatpush1.msra.mxu0 %v456
    %588 = vmatprep.subr.mxu0 0.0
    %589 = vmatpush1.msra.mxu0 %v457
    %590 = vmatprep.subr.mxu0 0.0
    %591 = vmatpush1.msra.mxu0 %v458
    %592 = vmatprep.subr.mxu0 0.0
    %593 = vmatpush1.msra.mxu0 %v459
    %594 = vmatprep.subr.mxu0 0.0
    %595 = vmatpush1.msra.mxu0 %v460
    %596 = vmatprep.subr.mxu0 0.0
    %597 = vmatpush1.msra.mxu0 %v461
    %598 = vmatprep.subr.mxu0 0.0
    %599 = vmatpush1.msra.mxu0 %v462
    %600 = vmatprep.subr.mxu0 0.0
    %601 = vmatpush1.msra.mxu0 %v463
    %602 = vmatprep.subr.mxu0 0.0
    %603 = vmatpush1.msra.mxu0 %v464
    %604 = vmatprep.subr.mxu0 0.0
    %605 = vmatpush1.msra.mxu0 %v465
    %606 = vmatprep.subr.mxu0 0.0
    %607 = vmatpush1.msra.mxu0 %v466
    %608 = vmatprep.mubr.f32.mxu0 %v427
    %609 = vmatmul.mubr.f32.gmra.mrb[0].mxu0 %v425
    %v610 = vpop.f32.mrb[0].mxu0
    %v611 = vadd.f32 %v541, %v610
    %v612 = vpop.f32.mrb[0].mxu0
    %613 = vdwg.mxu0
    %v614 = vld [vmem:[%s10] sm:$0x1]
    %v616 = vlaneseq
    %v617 = vshrl.u32 %v616, 7
    %v618 = vsub.s32 0, %v617
    %v619 = vrot.slane %v614, %v618
    %v621 = vadd.f32 %v611, %v619
    %vm622 = vcmask 130048
    %623 = vst.msk [vmem:[#allocation2] sm:$0xff] %vm622, %v621
    // Predicated region
    $region46: #{tpu_custom_call.1} parent=1 // pred_check
      _
    $region47: #{tpu_custom_call.1} parent=1 // pred_check_branch
      %625 = sbr.rel (0) target = $region49
    $region48: #{tpu_custom_call.1} parent=1 // pred_region
      %s627 = ssub.s32 128, 128
      %628 = vsyncadd [#allocation3], %s627
      %s630 = sshll.u32 [#allocation2], 4
      %s631 = int_to_ptr.vmem [resolvable:$true] %s630
      %633 = dma.vmem_to_hbm [thread:$0]  %s631, 128, %s11, [#allocation3]
    $region49: #{tpu_custom_call.1} parent=1 // pred_fallthru
      _
    // Predicated region
    $region50: #{tpu_custom_call.1} parent=1 // pred_check
      _
    $region51: #{tpu_custom_call.1} parent=1 // pred_check_branch
      %635 = sbr.rel (0) target = $region53
    $region52: #{tpu_custom_call.1} parent=1 // pred_region
      %636 = dma.done [#allocation3], 128
    $region53: #{tpu_custom_call.1} parent=1 // pred_fallthru
      _
    %637 = vsyncpa [#allocation3], 1

</llo_original>
